<compile_context>
chip_gen: v7x
topology: tpu7x:2x2x1
jax: 0.10.0
libtpu: 0.0.40
codegen_flags: <defaults>
</compile_context>

<pallas_src>
import jax
import jax.numpy as jnp
from jax.experimental import pallas as pl
from jax.experimental.pallas import tpu as pltpu

# ----------------------- small synthetic config -----------------------
B = 2                         # batch
C = 3                         # RGB channels
RES = 16                      # "input_resolution" of this synthetic model
P = 4                         # patch size (patch-embed conv, stride = P)
N = (RES // P) ** 2           # patches per image (16)
K = C * P * P                 # flattened patch length, channel fastest (48)
K_PAD = 128                   # lane-padded contraction depth
D_VIS = 128                   # visual width  (lane-dense)
L = 8                         # text context length
V = 64                        # vocab size
D_TXT = 128                   # text width    (lane-dense)
E = 128                       # shared embedding dim (lane-dense)

CLIP_MEAN = (0.48145466, 0.4578275, 0.40821073)
CLIP_STD = (0.26862954, 0.26130258, 0.27577711)


# ----------------------- fused Pallas kernel -----------------------
def _clip_encoder_kernel(patches_ref, w1_ref, vec_ref, proj_ref, teot_ref, out_ref):
    # ---------------- image path ----------------
    xp = patches_ref[...]                                  # bf16 [B*N, K_PAD]
    # Data-dependent /255 decision done in-kernel (torch.max(x) > 10.0 semantics);
    # CLIP Normalize mean/std already folded into w1 / vec[0] offline.
    needs_rescale = jnp.max(xp.astype(jnp.float32)) > 10.0
    scale = jnp.where(needs_rescale, 1.0 / 255.0, 1.0).astype(jnp.bfloat16)
    x = xp * scale                                         # bf16
    h = jnp.dot(x, w1_ref[...], preferred_element_type=jnp.float32)   # [B*N, D_VIS] f32
    h = jnp.maximum(h + vec_ref[0:1, :], 0.0)              # bias + ReLU (f32, VPU)
    # Global mean pool over patches: sublane (XLU) reduce, no pooling matmul.
    pooled = jnp.mean(h.reshape(B, N, D_VIS), axis=1)      # [B, D_VIS] f32
    img = jnp.dot(pooled.astype(jnp.bfloat16), proj_ref[0],
                  preferred_element_type=jnp.float32)      # visual proj [B, E] f32

    # ---------------- text path ----------------
    # teot_ref: [B, D_TXT] = (tok_emb + pos_emb) rows pre-selected at the EOT position
    # (LayerNorm is per-token, so normalizing only the selected row is equivalent).
    t = teot_ref[...]                                      # f32
    mu = jnp.mean(t, axis=-1, keepdims=True)
    var = jnp.mean((t - mu) ** 2, axis=-1, keepdims=True)
    tn = (t - mu) * jax.lax.rsqrt(var + 1e-5)              # ln_final (rsqrt -> EUP)
    tn = tn * vec_ref[1:2, :] + vec_ref[2:3, :]
    txt = jnp.dot(tn.astype(jnp.bfloat16), proj_ref[1],
                  preferred_element_type=jnp.float32)      # text proj [B, E] f32

    # Single lane-dense output slab: [:, :E] = image features, [:, E:] = text features.
    out_ref[:, :E] = img
    out_ref[:, E:] = txt


# ----------------------- params (Normalize folded ONCE, offline) -----------------------
def init_params(key):
    ks = jax.random.split(key, 5)
    w_patch = 0.02 * jax.random.normal(ks[0], (K, D_VIS), jnp.float32)
    b_patch = jnp.zeros((D_VIS,), jnp.float32)

    # Fold the STATIC CLIP Normalize into the patch-embed affine once:
    #   (x*scale - mean) * invstd @ W + b
    #     == (x*scale) @ (invstd[:,None] * W) + (b - (mean*invstd) @ W)
    # The data-dependent `scale` stays a runtime scalar handled inside the kernel.
    mean_k = jnp.tile(jnp.asarray(CLIP_MEAN, jnp.float32), P * P)          # (K,) channel fastest
    invstd_k = 1.0 / jnp.tile(jnp.asarray(CLIP_STD, jnp.float32), P * P)   # (K,)
    w_eff = invstd_k[:, None] * w_patch                                    # (K, D_VIS)
    b_eff = b_patch - (mean_k * invstd_k) @ w_patch                        # (D_VIS,)
    w1 = jnp.zeros((K_PAD, D_VIS), jnp.float32).at[:K, :].set(w_eff)
    w1 = w1.astype(jnp.bfloat16)                                           # lane-padded, bf16

    w_vis_proj = 0.02 * jax.random.normal(ks[1], (D_VIS, E), jnp.float32)
    w_txt_proj = 0.02 * jax.random.normal(ks[4], (D_TXT, E), jnp.float32)
    proj = jnp.stack([w_vis_proj, w_txt_proj]).astype(jnp.bfloat16)        # (2, 128, 128)

    # Coalesce the three tiny per-channel vectors into one (8,128) f32 slab (one DMA):
    #   row 0: patch-embed bias (Normalize-folded), row 1: ln_gamma, row 2: ln_beta.
    vec = jnp.zeros((8, 128), jnp.float32)
    vec = vec.at[0, :D_VIS].set(b_eff)
    vec = vec.at[1, :D_TXT].set(jnp.ones((D_TXT,), jnp.float32))
    vec = vec.at[2, :D_TXT].set(jnp.zeros((D_TXT,), jnp.float32))

    return {
        "w1": w1,
        "vec": vec,
        "proj": proj,
        "tok_table": 0.02 * jax.random.normal(ks[2], (V, D_TXT), jnp.float32),
        "pos_emb": 0.01 * jax.random.normal(ks[3], (L, D_TXT), jnp.float32),
    }


# ----------------------- wrapper -----------------------
def clip_based_encoder_forward(visual_nchw, tokens, params):
    """Mirrors CLIPBasedEncoder.forward -> (image_features, text_features)."""
    # ---- image glue: patchify NCHW -> (B*N, K), zero-pad lanes K -> K_PAD, bf16 ----
    # TODO(synk): at real (224x224) resolutions this patch slab should be DMA'd
    #             strip-wise from HBM inside the kernel instead of materialized here.
    x = jnp.transpose(visual_nchw, (0, 2, 3, 1))             # NCHW -> NHWC
    xb = x.reshape(B, RES // P, P, RES // P, P, C)
    xb = jnp.transpose(xb, (0, 1, 3, 2, 4, 5))                # [B, Hp, Wp, P, P, C]
    patches = xb.reshape(B * N, K).astype(jnp.float32)
    patches = jnp.pad(patches, ((0, 0), (0, K_PAD - K))).astype(jnp.bfloat16)

    # ---- text glue: token-embedding gather + pos emb + EOT-row select ----
    tok_emb = params["tok_table"][tokens]                     # [B, L, D_TXT]
    t_full = tok_emb + params["pos_emb"][None, :, :]
    eot = jnp.argmax(tokens, axis=-1)                         # CLIP: EOT = max token id
    t_eot = t_full[jnp.arange(B), eot].astype(jnp.float32)    # [B, D_TXT]

    vspec = pl.BlockSpec(memory_space=pltpu.MemorySpace.VMEM)
    out = pl.pallas_call(
        _clip_encoder_kernel,
        out_shape=jax.ShapeDtypeStruct((B, 2 * E), jnp.float32),
        in_specs=[vspec] * 5,
        out_specs=vspec,
    )(patches, params["w1"], params["vec"], params["proj"], t_eot)

    return out[:, :E], out[:, E:]


if __name__ == "__main__":
    key = jax.random.PRNGKey(0)
    kp, ki, kt = jax.random.split(key, 3)
    params = init_params(kp)

    # Visual input in NCHW (PyTorch convention), uint8-range values so the /255 branch fires.
    visual = jax.random.uniform(ki, (B, C, RES, RES), jnp.float32, 0.0, 255.0)
    tokens = jax.random.randint(kt, (B, L), 0, V, dtype=jnp.int32)

    img_feat, txt_feat = clip_based_encoder_forward(visual, tokens, params)
    jax.block_until_ready((img_feat, txt_feat))
    assert img_feat.shape == (B, E) and img_feat.dtype == jnp.float32
    assert txt_feat.shape == (B, E) and txt_feat.dtype == jnp.float32
    assert bool(jnp.all(jnp.isfinite(img_feat))) and bool(jnp.all(jnp.isfinite(txt_feat)))
    print("KERNEL_OK")
</pallas_src>

<mosaic_0001>
module attributes {stable_mosaic.version = 11 : i64} {
  func.func @_clip_encoder_kernel(%arg0: memref<32x128xbf16, #tpu.memory_space<vmem>>, %arg1: memref<128x128xbf16, #tpu.memory_space<vmem>>, %arg2: memref<8x128xf32, #tpu.memory_space<vmem>>, %arg3: memref<2x128x128xbf16, #tpu.memory_space<vmem>>, %arg4: memref<2x128xf32, #tpu.memory_space<vmem>>, %arg5: memref<2x256xf32, #tpu.memory_space<vmem>>) attributes {dimension_semantics = [], scalar_prefetch = 0 : i64, scratch_operands = 0 : i64, tpu.core_type = #tpu.core_type<tc>} {
    %c0 = arith.constant 0 : index
    %c0_0 = arith.constant 0 : index
    %0 = vector.load %arg0[%c0, %c0_0] : memref<32x128xbf16, #tpu.memory_space<vmem>>, vector<32x128xbf16>
    %1 = arith.extf %0 : vector<32x128xbf16> to vector<32x128xf32>
    %2 = vector.shape_cast %1 : vector<32x128xf32> to vector<1x32x128xf32>
    %cst = arith.constant dense<0xFF800000> : vector<1xf32>
    %3 = vector.multi_reduction <maximumf>, %2, %cst [1, 2] : vector<1x32x128xf32> to vector<1xf32>
    %4 = vector.shape_cast %3 : vector<1xf32> to vector<1x1x1xf32>
    %5 = vector.extract %4[0, 0, 0] : f32 from vector<1x1x1xf32>
    %cst_1 = arith.constant 1.000000e+01 : f32
    %6 = arith.cmpf ogt, %5, %cst_1 : f32
    %cst_2 = arith.constant 0.00392156886 : f32
    %cst_3 = arith.constant 1.000000e+00 : f32
    %7 = arith.select %6, %cst_2, %cst_3 : f32
    %8 = arith.truncf %7 : f32 to bf16
    %9 = vector.broadcast %8 : bf16 to vector<32x128xbf16>
    %10 = arith.mulf %0, %9 : vector<32x128xbf16>
    %c0_4 = arith.constant 0 : index
    %c0_5 = arith.constant 0 : index
    %11 = vector.load %arg1[%c0_4, %c0_5] : memref<128x128xbf16, #tpu.memory_space<vmem>>, vector<128x128xbf16>
    %cst_6 = arith.constant dense<0.000000e+00> : vector<32x128xf32>
    %12 = tpu.matmul %10, %11, %cst_6 {dimension_numbers = #tpu.dot_dimension_numbers<[1], [0], [0], [1], [0, 0, 1, 1], [], []>} : vector<32x128xbf16>, vector<128x128xbf16>, vector<32x128xf32> -> vector<32x128xf32>
    %c0_7 = arith.constant 0 : index
    %c0_8 = arith.constant 0 : index
    %13 = vector.load %arg2[%c0_7, %c0_8] : memref<8x128xf32, #tpu.memory_space<vmem>>, vector<1x128xf32>
    %14 = vector.broadcast %13 : vector<1x128xf32> to vector<32x128xf32>
    %15 = arith.addf %12, %14 : vector<32x128xf32>
    %cst_9 = arith.constant 0.000000e+00 : f32
    %16 = vector.broadcast %cst_9 : f32 to vector<32x128xf32>
    %17 = arith.maximumf %15, %16 : vector<32x128xf32>
    %18 = vector.shape_cast %17 : vector<32x128xf32> to vector<2x16x128xf32>
    %cst_10 = arith.constant dense<0.000000e+00> : vector<2x128xf32>
    %19 = vector.multi_reduction <add>, %18, %cst_10 [1] : vector<2x16x128xf32> to vector<2x128xf32>
    %cst_11 = arith.constant 1.600000e+01 : f32
    %20 = vector.broadcast %cst_11 : f32 to vector<2x128xf32>
    %21 = arith.divf %19, %20 : vector<2x128xf32>
    %22 = arith.truncf %21 : vector<2x128xf32> to vector<2x128xbf16>
    %c0_12 = arith.constant 0 : index
    %c0_13 = arith.constant 0 : index
    %c0_14 = arith.constant 0 : index
    %23 = vector.load %arg3[%c0_12, %c0_13, %c0_14] : memref<2x128x128xbf16, #tpu.memory_space<vmem>>, vector<1x128x128xbf16>
    %24 = vector.shape_cast %23 : vector<1x128x128xbf16> to vector<128x128xbf16>
    %cst_15 = arith.constant dense<0.000000e+00> : vector<2x128xf32>
    %25 = tpu.matmul %22, %24, %cst_15 {dimension_numbers = #tpu.dot_dimension_numbers<[1], [0], [0], [1], [0, 0, 1, 1], [], []>} : vector<2x128xbf16>, vector<128x128xbf16>, vector<2x128xf32> -> vector<2x128xf32>
    %c0_16 = arith.constant 0 : index
    %c0_17 = arith.constant 0 : index
    %26 = vector.load %arg4[%c0_16, %c0_17] : memref<2x128xf32, #tpu.memory_space<vmem>>, vector<2x128xf32>
    %cst_18 = arith.constant dense<0.000000e+00> : vector<2xf32>
    %27 = vector.multi_reduction <add>, %26, %cst_18 [1] : vector<2x128xf32> to vector<2xf32>
    %28 = vector.shape_cast %27 : vector<2xf32> to vector<2x1xf32>
    %cst_19 = arith.constant 1.280000e+02 : f32
    %29 = vector.broadcast %cst_19 : f32 to vector<2x1xf32>
    %30 = arith.divf %28, %29 : vector<2x1xf32>
    %31 = vector.broadcast %30 : vector<2x1xf32> to vector<2x128xf32>
    %32 = arith.subf %26, %31 : vector<2x128xf32>
    %33 = arith.mulf %32, %32 : vector<2x128xf32>
    %cst_20 = arith.constant dense<0.000000e+00> : vector<2xf32>
    %34 = vector.multi_reduction <add>, %33, %cst_20 [1] : vector<2x128xf32> to vector<2xf32>
    %35 = vector.shape_cast %34 : vector<2xf32> to vector<2x1xf32>
    %cst_21 = arith.constant 1.280000e+02 : f32
    %36 = vector.broadcast %cst_21 : f32 to vector<2x1xf32>
    %37 = arith.divf %35, %36 : vector<2x1xf32>
    %38 = vector.broadcast %30 : vector<2x1xf32> to vector<2x128xf32>
    %39 = arith.subf %26, %38 : vector<2x128xf32>
    %cst_22 = arith.constant 9.99999974E-6 : f32
    %40 = vector.broadcast %cst_22 : f32 to vector<2x1xf32>
    %41 = arith.addf %37, %40 : vector<2x1xf32>
    %42 = math.rsqrt %41 : vector<2x1xf32>
    %43 = vector.broadcast %42 : vector<2x1xf32> to vector<2x128xf32>
    %44 = arith.mulf %39, %43 : vector<2x128xf32>
    %c1 = arith.constant 1 : index
    %c0_23 = arith.constant 0 : index
    %45 = vector.load %arg2[%c1, %c0_23] : memref<8x128xf32, #tpu.memory_space<vmem>>, vector<1x128xf32>
    %46 = vector.broadcast %45 : vector<1x128xf32> to vector<2x128xf32>
    %47 = arith.mulf %44, %46 : vector<2x128xf32>
    %c2 = arith.constant 2 : index
    %c0_24 = arith.constant 0 : index
    %48 = vector.load %arg2[%c2, %c0_24] : memref<8x128xf32, #tpu.memory_space<vmem>>, vector<1x128xf32>
    %49 = vector.broadcast %48 : vector<1x128xf32> to vector<2x128xf32>
    %50 = arith.addf %47, %49 : vector<2x128xf32>
    %51 = arith.truncf %50 : vector<2x128xf32> to vector<2x128xbf16>
    %c1_25 = arith.constant 1 : index
    %c0_26 = arith.constant 0 : index
    %c0_27 = arith.constant 0 : index
    %52 = vector.load %arg3[%c1_25, %c0_26, %c0_27] : memref<2x128x128xbf16, #tpu.memory_space<vmem>>, vector<1x128x128xbf16>
    %53 = vector.shape_cast %52 : vector<1x128x128xbf16> to vector<128x128xbf16>
    %cst_28 = arith.constant dense<0.000000e+00> : vector<2x128xf32>
    %54 = tpu.matmul %51, %53, %cst_28 {dimension_numbers = #tpu.dot_dimension_numbers<[1], [0], [0], [1], [0, 0, 1, 1], [], []>} : vector<2x128xbf16>, vector<128x128xbf16>, vector<2x128xf32> -> vector<2x128xf32>
    %c0_29 = arith.constant 0 : index
    %c0_30 = arith.constant 0 : index
    %55 = vector.load %arg5[%c0_29, %c0_30] : memref<2x256xf32, #tpu.memory_space<vmem>>, vector<2x128xf32>
    tpu.vector_store %arg5[%c0_29, %c0_30], %25 {strides = array<i32>} : memref<2x256xf32, #tpu.memory_space<vmem>>, vector<2x128xf32>,
    %c0_31 = arith.constant 0 : index
    %c128 = arith.constant 128 : index
    %56 = vector.load %arg5[%c0_31, %c128] : memref<2x256xf32, #tpu.memory_space<vmem>>, vector<2x128xf32>
    tpu.vector_store %arg5[%c0_31, %c128], %54 {strides = array<i32>} : memref<2x256xf32, #tpu.memory_space<vmem>>, vector<2x128xf32>,
    return
  }
}

</mosaic_0001>

<llo_original>
// kernel: tpu_custom_call.1
$region0: #{tpu_custom_call.1}
  #allocation0 [shape = 'u32[]', space=smem, size = 0x4, offset = 0x4, fixed_abs, tag = 'smem constant byte address 0x4 - core index']
  #allocation1 [shape = 'u32[144,128]{1,0:T(1,128)}', space=vmem, size = 0x12000, scoped, tag = 'internal scratch']
  %s0 = inlined_call_operand.hbm [shape: bf16[32,128], index: 0, kind: input, shape index: {}]
  %s1 = inlined_call_operand.hbm [shape: bf16[128,128], index: 1, kind: input, shape index: {}]
  %s2 = inlined_call_operand.hbm [shape: f32[8,128], index: 2, kind: input, shape index: {}]
  %s3 = inlined_call_operand.hbm [shape: bf16[2,128,128], index: 3, kind: input, shape index: {}]
  %s4 = inlined_call_operand.vmem [shape: f32[2,128], index: 4, kind: input, shape index: {}]
  %s5 = inlined_call_operand.hbm [shape: f32[2,256], index: 5, kind: output, shape index: {}]
  %s6 = sld [smem:[#allocation0]]
  $region46: #{tpu_custom_call.1} parent=0
    _
  %s8 = ssub.s32 1, %s6
  %s9 = scalar_select 0, %s8, %s6
  $region1: #{tpu_custom_call.1} parent=0
    #allocation2 [shape = 'u8[8192]{0}', space=vmem, size = 0x2000, scoped, tag = 'input window, operand 0, single buffered']
    #allocation3 [shape = 's32[1]{0}', space=sflag, size = 0x4, scoped, tag = 'scoped memory for tpu_custom_call.1']
    #allocation4 [shape = 's32[1]{0}', space=sflag, size = 0x4, scoped, tag = 'scoped memory for tpu_custom_call.1']
    #allocation5 [shape = 'u8[32768]{0}', space=vmem, size = 0x8000, scoped, tag = 'input window, operand 1, single buffered']
    #allocation6 [shape = 's32[1]{0}', space=sflag, size = 0x4, scoped, tag = 'scoped memory for tpu_custom_call.1']
    #allocation7 [shape = 'u8[4096]{0}', space=vmem, size = 0x1000, scoped, tag = 'input window, operand 2, single buffered']
    #allocation8 [shape = 'u8[65536]{0}', space=vmem, size = 0x10000, scoped, tag = 'input window, operand 3, single buffered']
    #allocation9 [shape = 's32[1]{0}', space=sflag, size = 0x4, scoped, tag = 'scoped memory for tpu_custom_call.1']
    #allocation10 [shape = 'u8[2048]{0}', space=vmem, size = 0x800, scoped, tag = 'output window, operand 0, single buffered']
    %10 = vsyncpa [#allocation3], 0
    %11 = vsyncpa [#allocation6], 0
    %12 = vsyncpa [#allocation9], 0
    %13 = vsyncpa [#allocation4], 0
    // Predicated region
    $region2: #{tpu_custom_call.1} parent=1 // pred_check
      _
    $region3: #{tpu_custom_call.1} parent=1 // pred_check_branch
      %15 = sbr.rel (0) target = $region5
    $region4: #{tpu_custom_call.1} parent=1 // pred_region
      %s17 = ssub.s32 256, 256
      %18 = vsyncadd [#allocation3], %s17
      %s19 = sshll.u32 [#allocation2], 4
      %s20 = int_to_ptr.vmem [resolvable:$true] %s19
      %25 = dma.hbm_to_vmem [thread:$0]  %s0, 256, %s20, [#allocation3], 64, 64, 4
    $region5: #{tpu_custom_call.1} parent=1 // pred_fallthru
      _
    // Predicated region
    $region6: #{tpu_custom_call.1} parent=1 // pred_check
      _
    $region7: #{tpu_custom_call.1} parent=1 // pred_check_branch
      %27 = sbr.rel (0) target = $region9
    $region8: #{tpu_custom_call.1} parent=1 // pred_region
      %s29 = ssub.s32 1024, 1024
      %30 = vsyncadd [#allocation6], %s29
      %s31 = sshll.u32 [#allocation5], 4
      %s32 = int_to_ptr.vmem [resolvable:$true] %s31
      %37 = dma.hbm_to_vmem [thread:$0]  %s1, 1024, %s32, [#allocation6], 64, 64, 4
    $region9: #{tpu_custom_call.1} parent=1 // pred_fallthru
      _
    // Predicated region
    $region10: #{tpu_custom_call.1} parent=1 // pred_check
      _
    $region11: #{tpu_custom_call.1} parent=1 // pred_check_branch
      %39 = sbr.rel (0) target = $region13
    $region12: #{tpu_custom_call.1} parent=1 // pred_region
      %s41 = ssub.s32 128, 128
      %42 = vsyncadd [#allocation6], %s41
      %s44 = sshll.u32 [#allocation7], 4
      %s45 = int_to_ptr.vmem [resolvable:$true] %s44
      %47 = dma.hbm_to_vmem [thread:$0]  %s2, 128, %s45, [#allocation6]
    $region13: #{tpu_custom_call.1} parent=1 // pred_fallthru
      _
    // Predicated region
    $region14: #{tpu_custom_call.1} parent=1 // pred_check
      _
    $region15: #{tpu_custom_call.1} parent=1 // pred_check_branch
      %49 = sbr.rel (0) target = $region17
    $region16: #{tpu_custom_call.1} parent=1 // pred_region
      %s51 = ssub.s32 2048, 2048
      %52 = vsyncadd [#allocation9], %s51
      %s53 = sshll.u32 [#allocation8], 4
      %s54 = int_to_ptr.vmem [resolvable:$true] %s53
      %59 = dma.hbm_to_vmem [thread:$0]  %s3, 2048, %s54, [#allocation9], 64, 64, 4
    $region17: #{tpu_custom_call.1} parent=1 // pred_fallthru
      _
    // Predicated region
    $region18: #{tpu_custom_call.1} parent=1 // pred_check
      _
    $region19: #{tpu_custom_call.1} parent=1 // pred_check_branch
      %61 = sbr.rel (0) target = $region21
    $region20: #{tpu_custom_call.1} parent=1 // pred_region
      _
    $region21: #{tpu_custom_call.1} parent=1 // pred_fallthru
      _
    // Predicated region
    $region22: #{tpu_custom_call.1} parent=1 // pred_check
      _
    $region23: #{tpu_custom_call.1} parent=1 // pred_check_branch
      %63 = sbr.rel (0) target = $region25
    $region24: #{tpu_custom_call.1} parent=1 // pred_region
      %64 = dma.done [#allocation3], 256
    $region25: #{tpu_custom_call.1} parent=1 // pred_fallthru
      _
    // Predicated region
    $region26: #{tpu_custom_call.1} parent=1 // pred_check
      _
    $region27: #{tpu_custom_call.1} parent=1 // pred_check_branch
      %66 = sbr.rel (0) target = $region29
    $region28: #{tpu_custom_call.1} parent=1 // pred_region
      %67 = dma.done [#allocation6], 1024
    $region29: #{tpu_custom_call.1} parent=1 // pred_fallthru
      _
    // Predicated region
    $region30: #{tpu_custom_call.1} parent=1 // pred_check
      _
    $region31: #{tpu_custom_call.1} parent=1 // pred_check_branch
      %69 = sbr.rel (0) target = $region33
    $region32: #{tpu_custom_call.1} parent=1 // pred_region
      %70 = dma.done [#allocation6], 128
    $region33: #{tpu_custom_call.1} parent=1 // pred_fallthru
      _
    // Predicated region
    $region34: #{tpu_custom_call.1} parent=1 // pred_check
      _
    $region35: #{tpu_custom_call.1} parent=1 // pred_check_branch
      %72 = sbr.rel (0) target = $region37
    $region36: #{tpu_custom_call.1} parent=1 // pred_region
      %73 = dma.done [#allocation9], 2048
    $region37: #{tpu_custom_call.1} parent=1 // pred_fallthru
      _
    %v75 = vld [vmem:[#allocation2] sm:$0xf]
    %v76 = vld [vmem:[#allocation2 + $0x4] sm:$0xf]
    %v77 = vld [vmem:[#allocation2 + $0x8] sm:$0xf]
    %v78 = vld [vmem:[#allocation2 + $0xc] sm:$0xf]
    %v79 = vunpack.c.l.bf16 %v75
    %v80 = vunpack.c.l.bf16 %v76
    %v81 = vunpack.c.l.bf16 %v77
    %v82 = vunpack.c.l.bf16 %v78
    %v83 = vmax.f32 %v79, %v80
    %v84 = vmax.f32 %v81, %v82
    %v85 = vmax.f32 %v83, %v84
    %86 = vmax.xlane.f32.xlu0 %v85
    %v87 = vpop.xlane.xlu0 %86
    %v88 = vrot.slane %v87, 4
    %v89 = vmax.f32 %v87, %v88
    %v90 = vrot.slane %v89, 2
    %v91 = vmax.f32 %v89, %v90
    %v92 = vrot.slane %v91, 1
    %v93 = vmax.f32 %v91, %v92
    %s94 = vtos %v93
    %p95 = scmp.gt.f32.partialorder %s94, 10.0
    %s96 = scalar_select %p95, 0.003921569, 1.0
    %p98 = scmp.ne.f32.partialorder %s96, %s96
    %s99 = sshrl.u32 %s96, 16
    %s100 = sand.u32 %s99, 1
    %s101 = sadd.s32 32767, %s100
    %s102 = sadd.s32 %s96, %s101
    %s103 = sand.u32 %s102, 4294901760
    %s104 = scalar_select %p98, 2143289344, %s103
    %s106 = sshrl.u32 %s104, 16
    %s107 = sshll.u32 %s106, 16
    %s108 = sor.u32 %s106, %s107
    %v109 = vstv %s108
    %v111 = vmul.bf16 %v75, %v109
    %v112 = vmul.bf16 %v76, %v109
    %v113 = vmul.bf16 %v77, %v109
    %v114 = vmul.bf16 %v78, %v109
    %v115 = vld [vmem:[#allocation5] sm:$0xf]
    %v116 = vld [vmem:[#allocation5 + $0x4] sm:$0xf]
    %v117 = vld [vmem:[#allocation5 + $0x8] sm:$0xf]
    %v118 = vld [vmem:[#allocation5 + $0xc] sm:$0xf]
    %v119 = vld [vmem:[#allocation5 + $0x10] sm:$0xf]
    %v120 = vld [vmem:[#allocation5 + $0x14] sm:$0xf]
    %v121 = vld [vmem:[#allocation5 + $0x18] sm:$0xf]
    %v122 = vld [vmem:[#allocation5 + $0x1c] sm:$0xf]
    %v123 = vld [vmem:[#allocation5 + $0x20] sm:$0xf]
    %v124 = vld [vmem:[#allocation5 + $0x24] sm:$0xf]
    %v125 = vld [vmem:[#allocation5 + $0x28] sm:$0xf]
    %v126 = vld [vmem:[#allocation5 + $0x2c] sm:$0xf]
    %v127 = vld [vmem:[#allocation5 + $0x30] sm:$0xf]
    %v128 = vld [vmem:[#allocation5 + $0x34] sm:$0xf]
    %v129 = vld [vmem:[#allocation5 + $0x38] sm:$0xf]
    %v130 = vld [vmem:[#allocation5 + $0x3c] sm:$0xf]
    %v131 = vld [vmem:[#allocation7] sm:$0x1]
    %v132 = vlaneseq
    %v133 = vshrl.u32 %v132, 7
    %v134 = vsub.s32 0, %v133
    %v135 = vrot.slane %v131, %v134
    %v140 = vunpack.c.l.b16 %v111
    %v141 = vunpack.c.l.b16 %v112
    %v142 = vunpack.c.l.b16 %v113
    %v143 = vunpack.c.l.b16 %v114
    %v144 = vpack.c.b16 %v141, %v140
    %v145 = vpack.c.b16 %v143, %v142
    %v164 = vunpack.c.l.b16 %v115
    %v165 = vunpack.c.l.b16 %v116
    %v166 = vunpack.c.l.b16 %v117
    %v167 = vunpack.c.l.b16 %v118
    %v168 = vunpack.c.l.b16 %v119
    %v169 = vunpack.c.l.b16 %v120
    %v170 = vunpack.c.l.b16 %v121
    %v171 = vunpack.c.l.b16 %v122
    %v172 = vunpack.c.l.b16 %v123
    %v173 = vunpack.c.l.b16 %v124
    %v174 = vunpack.c.l.b16 %v125
    %v175 = vunpack.c.l.b16 %v126
    %v176 = vunpack.c.l.b16 %v127
    %v177 = vunpack.c.l.b16 %v128
    %v178 = vunpack.c.l.b16 %v129
    %v179 = vunpack.c.l.b16 %v130
    %v180 = vpack.c.b16 %v165, %v164
    %v181 = vpack.c.b16 %v167, %v166
    %v182 = vpack.c.b16 %v169, %v168
    %v183 = vpack.c.b16 %v171, %v170
    %v184 = vpack.c.b16 %v173, %v172
    %v185 = vpack.c.b16 %v175, %v174
    %v186 = vpack.c.b16 %v177, %v176
    %v187 = vpack.c.b16 %v179, %v178
    %196 = vmatprep.subr.bf16.mxu0 0
    %197 = vmatpush1.bf16.msra.mxu0 %v180
    %198 = vmatprep.subr.bf16.mxu0 0
    %199 = vmatpush1.bf16.msra.mxu0 %v181
    %200 = vmatprep.subr.bf16.mxu0 0
    %201 = vmatpush1.bf16.msra.mxu0 %v182
    %202 = vmatprep.subr.bf16.mxu0 0
    %203 = vmatpush1.bf16.msra.mxu0 %v183
    %204 = vmatprep.subr.bf16.mxu0 0
    %205 = vmatpush1.bf16.msra.mxu0 %v184
    %206 = vmatprep.subr.bf16.mxu0 0
    %207 = vmatpush1.bf16.msra.mxu0 %v185
    %208 = vmatprep.subr.bf16.mxu0 0
    %209 = vmatpush1.bf16.msra.mxu0 %v186
    %210 = vmatprep.subr.bf16.mxu0 0
    %211 = vmatpush1.bf16.msra.mxu0 %v187
    %212 = vmatprep.subr.bf16.mxu0 0
    %213 = vmatpush1.bf16.msra.mxu0 0
    %214 = vmatprep.subr.bf16.mxu0 0
    %215 = vmatpush1.bf16.msra.mxu0 0
    %216 = vmatprep.subr.bf16.mxu0 0
    %217 = vmatpush1.bf16.msra.mxu0 0
    %218 = vmatprep.subr.bf16.mxu0 0
    %219 = vmatpush1.bf16.msra.mxu0 0
    %220 = vmatprep.subr.bf16.mxu0 0
    %221 = vmatpush1.bf16.msra.mxu0 0
    %222 = vmatprep.subr.bf16.mxu0 0
    %223 = vmatpush1.bf16.msra.mxu0 0
    %224 = vmatprep.subr.bf16.mxu0 0
    %225 = vmatpush1.bf16.msra.mxu0 0
    %226 = vmatprep.subr.bf16.mxu0 0
    %227 = vmatpush1.bf16.msra.mxu0 0
    %228 = vmatprep.mubr.bf16.mxu0 0
    %229 = vmatmul.mubr.bf16.gmra.mrb[0].mxu0 %v144
    %v230 = vpop.f32.mrb[0].mxu0
    %v231 = vadd.f32 %v135, %v230
    %v232 = vpop.f32.mrb[0].mxu0
    %v233 = vpop.f32.mrb[0].mxu0
    %v234 = vadd.f32 %v135, %v233
    %v235 = vpop.f32.mrb[0].mxu0
    %236 = vmatprep.mubr.bf16.mxu0 0
    %237 = vmatmul.mubr.bf16.gmra.mrb[0].mxu0 %v145
    %v238 = vpop.f32.mrb[0].mxu0
    %v239 = vadd.f32 %v135, %v238
    %v240 = vpop.f32.mrb[0].mxu0
    %v241 = vpop.f32.mrb[0].mxu0
    %v242 = vadd.f32 %v135, %v241
    %v243 = vpop.f32.mrb[0].mxu0
    %244 = vdwg.mxu0
    %v245 = vmax.f32 %v231, 0.0
    %v246 = vmax.f32 %v234, 0.0
    %v247 = vmax.f32 %v239, 0.0
    %v248 = vmax.f32 %v242, 0.0
    %v249 = vadd.f32 %v245, %v246
    %v250 = vrot.slane %v249, 4
    %v251 = vadd.f32 %v249, %v250
    %v252 = vrot.slane %v251, 2
    %v253 = vadd.f32 %v251, %v252
    %v254 = vrot.slane %v253, 1
    %v255 = vadd.f32 %v253, %v254
    %v256 = vadd.f32 %v247, %v248
    %v257 = vrot.slane %v256, 4
    %v258 = vadd.f32 %v256, %v257
    %v259 = vrot.slane %v258, 2
    %v260 = vadd.f32 %v258, %v259
    %v261 = vrot.slane %v260, 1
    %v262 = vadd.f32 %v260, %v261
    %v263 = vrcp.pop 16.0
    %v264 = vmul.f32 %v255, %v263
    %v265 = vmul.f32 %v262, %v263
    %v266 = vpack.c.bf16 %v264, %v264
    %v267 = vpack.c.bf16 %v265, %v265
    %v268 = vld [vmem:[#allocation8] sm:$0xf]
    %v269 = vld [vmem:[#allocation8 + $0x4] sm:$0xf]
    %v270 = vld [vmem:[#allocation8 + $0x8] sm:$0xf]
    %v271 = vld [vmem:[#allocation8 + $0xc] sm:$0xf]
    %v272 = vld [vmem:[#allocation8 + $0x10] sm:$0xf]
    %v273 = vld [vmem:[#allocation8 + $0x14] sm:$0xf]
    %v274 = vld [vmem:[#allocation8 + $0x18] sm:$0xf]
    %v275 = vld [vmem:[#allocation8 + $0x1c] sm:$0xf]
    %v276 = vld [vmem:[#allocation8 + $0x20] sm:$0xf]
    %v277 = vld [vmem:[#allocation8 + $0x24] sm:$0xf]
    %v278 = vld [vmem:[#allocation8 + $0x28] sm:$0xf]
    %v279 = vld [vmem:[#allocation8 + $0x2c] sm:$0xf]
    %v280 = vld [vmem:[#allocation8 + $0x30] sm:$0xf]
    %v281 = vld [vmem:[#allocation8 + $0x34] sm:$0xf]
    %v282 = vld [vmem:[#allocation8 + $0x38] sm:$0xf]
    %v283 = vld [vmem:[#allocation8 + $0x3c] sm:$0xf]
    %v286 = vunpack.c.l.b16 %v266
    %v287 = vunpack.c.l.b16 %v267
    %vm288 = vcmask 1041409
    %v289 = vsel %vm288, %v287, %v286
    %v290 = vpack.c.b16 %v289, %v289
    %v308 = vunpack.c.l.b16 %v268
    %v309 = vunpack.c.l.b16 %v269
    %v310 = vunpack.c.l.b16 %v270
    %v311 = vunpack.c.l.b16 %v271
    %v312 = vunpack.c.l.b16 %v272
    %v313 = vunpack.c.l.b16 %v273
    %v314 = vunpack.c.l.b16 %v274
    %v315 = vunpack.c.l.b16 %v275
    %v316 = vunpack.c.l.b16 %v276
    %v317 = vunpack.c.l.b16 %v277
    %v318 = vunpack.c.l.b16 %v278
    %v319 = vunpack.c.l.b16 %v279
    %v320 = vunpack.c.l.b16 %v280
    %v321 = vunpack.c.l.b16 %v281
    %v322 = vunpack.c.l.b16 %v282
    %v323 = vunpack.c.l.b16 %v283
    %v324 = vpack.c.b16 %v309, %v308
    %v325 = vpack.c.b16 %v311, %v310
    %v326 = vpack.c.b16 %v313, %v312
    %v327 = vpack.c.b16 %v315, %v314
    %v328 = vpack.c.b16 %v317, %v316
    %v329 = vpack.c.b16 %v319, %v318
    %v330 = vpack.c.b16 %v321, %v320
    %v331 = vpack.c.b16 %v323, %v322
    %340 = vmatprep.subr.bf16.mxu0 0
    %341 = vmatpush1.bf16.msra.mxu0 %v324
    %342 = vmatprep.subr.bf16.mxu0 0
    %343 = vmatpush1.bf16.msra.mxu0 %v325
    %344 = vmatprep.subr.bf16.mxu0 0
    %345 = vmatpush1.bf16.msra.mxu0 %v326
    %346 = vmatprep.subr.bf16.mxu0 0
    %347 = vmatpush1.bf16.msra.mxu0 %v327
    %348 = vmatprep.subr.bf16.mxu0 0
    %349 = vmatpush1.bf16.msra.mxu0 %v328
    %350 = vmatprep.subr.bf16.mxu0 0
    %351 = vmatpush1.bf16.msra.mxu0 %v329
    %352 = vmatprep.subr.bf16.mxu0 0
    %353 = vmatpush1.bf16.msra.mxu0 %v330
    %354 = vmatprep.subr.bf16.mxu0 0
    %355 = vmatpush1.bf16.msra.mxu0 %v331
    %356 = vmatprep.subr.bf16.mxu0 0
    %357 = vmatpush1.bf16.msra.mxu0 0
    %358 = vmatprep.subr.bf16.mxu0 0
    %359 = vmatpush1.bf16.msra.mxu0 0
    %360 = vmatprep.subr.bf16.mxu0 0
    %361 = vmatpush1.bf16.msra.mxu0 0
    %362 = vmatprep.subr.bf16.mxu0 0
    %363 = vmatpush1.bf16.msra.mxu0 0
    %364 = vmatprep.subr.bf16.mxu0 0
    %365 = vmatpush1.bf16.msra.mxu0 0
    %366 = vmatprep.subr.bf16.mxu0 0
    %367 = vmatpush1.bf16.msra.mxu0 0
    %368 = vmatprep.subr.bf16.mxu0 0
    %369 = vmatpush1.bf16.msra.mxu0 0
    %370 = vmatprep.subr.bf16.mxu0 0
    %371 = vmatpush1.bf16.msra.mxu0 0
    %372 = vmatprep.mubr.bf16.mxu0 0
    %373 = vmatmul.mubr.bf16.gmra.mrb[0].mxu0 %v290
    %v374 = vpop.f32.mrb[0].mxu0
    %v375 = vadd.f32 0.0, %v374
    %v376 = vpop.f32.mrb[0].mxu0
    %v377 = vpop.f32.mrb[0].mxu0
    %v378 = vpop.f32.mrb[0].mxu0
    %379 = vdwg.mxu0
    %v380 = vld [vmem:[%s4] sm:$0x3]
    %vm381 = vcmask 1041408
    %v382 = vsel %vm381, %v380, 0.0
    %383 = vadd.xlane.f32.xlu0 %v382
    %v384 = vpop.xlane.xlu0 %383
    %v385 = vrcp.pop 128.0
    %v386 = vmul.f32 %v384, %v385
    %v387 = vsub.f32 %v380, %v386
    %v388 = vmul.f32 %v387, %v387
    %v389 = vsel %vm381, %v388, 0.0
    %390 = vadd.xlane.f32.xlu0 %v389
    %v391 = vpop.xlane.xlu0 %390
    %v392 = vmul.f32 %v391, %v385
    %v393 = vadd.f32 %v392, 1e-05
    %v394 = vrsqrt.pop %v393
    %v395 = vmul.f32 %v387, %v394
    %v396 = vld [vmem:[#allocation7 + $0x1] sm:$0x1]
    %v397 = vlaneseq
    %v398 = vshrl.u32 %v397, 7
    %v399 = vsub.s32 0, %v398
    %v400 = vrot.slane %v396, %v399
    %v401 = vmul.f32 %v395, %v400
    %v402 = vld [vmem:[#allocation7 + $0x2] sm:$0x1]
    %v403 = vlaneseq
    %v404 = vshrl.u32 %v403, 7
    %v405 = vsub.s32 0, %v404
    %v406 = vrot.slane %v402, %v405
    %v407 = vadd.f32 %v401, %v406
    %v408 = vpack.c.bf16 %v407, %v407
    %s409 = scalar_lea.vmem [#allocation8], 64
    %v410 = vld [vmem:[%s409] sm:$0xf]
    %v411 = vld [vmem:[%s409 + $0x4] sm:$0xf]
    %v412 = vld [vmem:[%s409 + $0x8] sm:$0xf]
    %v413 = vld [vmem:[%s409 + $0xc] sm:$0xf]
    %v414 = vld [vmem:[%s409 + $0x10] sm:$0xf]
    %v415 = vld [vmem:[%s409 + $0x14] sm:$0xf]
    %v416 = vld [vmem:[%s409 + $0x18] sm:$0xf]
    %v417 = vld [vmem:[%s409 + $0x1c] sm:$0xf]
    %v418 = vld [vmem:[%s409 + $0x20] sm:$0xf]
    %v419 = vld [vmem:[%s409 + $0x24] sm:$0xf]
    %v420 = vld [vmem:[%s409 + $0x28] sm:$0xf]
    %v421 = vld [vmem:[%s409 + $0x2c] sm:$0xf]
    %v422 = vld [vmem:[%s409 + $0x30] sm:$0xf]
    %v423 = vld [vmem:[%s409 + $0x34] sm:$0xf]
    %v424 = vld [vmem:[%s409 + $0x38] sm:$0xf]
    %v425 = vld [vmem:[%s409 + $0x3c] sm:$0xf]
    %v442 = vunpack.c.l.b16 %v410
    %v443 = vunpack.c.l.b16 %v411
    %v444 = vunpack.c.l.b16 %v412
    %v445 = vunpack.c.l.b16 %v413
    %v446 = vunpack.c.l.b16 %v414
    %v447 = vunpack.c.l.b16 %v415
    %v448 = vunpack.c.l.b16 %v416
    %v449 = vunpack.c.l.b16 %v417
    %v450 = vunpack.c.l.b16 %v418
    %v451 = vunpack.c.l.b16 %v419
    %v452 = vunpack.c.l.b16 %v420
    %v453 = vunpack.c.l.b16 %v421
    %v454 = vunpack.c.l.b16 %v422
    %v455 = vunpack.c.l.b16 %v423
    %v456 = vunpack.c.l.b16 %v424
    %v457 = vunpack.c.l.b16 %v425
    %v458 = vpack.c.b16 %v443, %v442
    %v459 = vpack.c.b16 %v445, %v444
    %v460 = vpack.c.b16 %v447, %v446
    %v461 = vpack.c.b16 %v449, %v448
    %v462 = vpack.c.b16 %v451, %v450
    %v463 = vpack.c.b16 %v453, %v452
    %v464 = vpack.c.b16 %v455, %v454
    %v465 = vpack.c.b16 %v457, %v456
    %474 = vmatprep.subr.bf16.mxu0 0
    %475 = vmatpush1.bf16.msra.mxu0 %v458
    %476 = vmatprep.subr.bf16.mxu0 0
    %477 = vmatpush1.bf16.msra.mxu0 %v459
    %478 = vmatprep.subr.bf16.mxu0 0
    %479 = vmatpush1.bf16.msra.mxu0 %v460
    %480 = vmatprep.subr.bf16.mxu0 0
    %481 = vmatpush1.bf16.msra.mxu0 %v461
    %482 = vmatprep.subr.bf16.mxu0 0
    %483 = vmatpush1.bf16.msra.mxu0 %v462
    %484 = vmatprep.subr.bf16.mxu0 0
    %485 = vmatpush1.bf16.msra.mxu0 %v463
    %486 = vmatprep.subr.bf16.mxu0 0
    %487 = vmatpush1.bf16.msra.mxu0 %v464
    %488 = vmatprep.subr.bf16.mxu0 0
    %489 = vmatpush1.bf16.msra.mxu0 %v465
    %490 = vmatprep.subr.bf16.mxu0 0
    %491 = vmatpush1.bf16.msra.mxu0 0
    %492 = vmatprep.subr.bf16.mxu0 0
    %493 = vmatpush1.bf16.msra.mxu0 0
    %494 = vmatprep.subr.bf16.mxu0 0
    %495 = vmatpush1.bf16.msra.mxu0 0
    %496 = vmatprep.subr.bf16.mxu0 0
    %497 = vmatpush1.bf16.msra.mxu0 0
    %498 = vmatprep.subr.bf16.mxu0 0
    %499 = vmatpush1.bf16.msra.mxu0 0
    %500 = vmatprep.subr.bf16.mxu0 0
    %501 = vmatpush1.bf16.msra.mxu0 0
    %502 = vmatprep.subr.bf16.mxu0 0
    %503 = vmatpush1.bf16.msra.mxu0 0
    %504 = vmatprep.subr.bf16.mxu0 0
    %505 = vmatpush1.bf16.msra.mxu0 0
    %506 = vmatprep.mubr.bf16.mxu0 0
    %507 = vmatmul.mubr.bf16.gmra.mrb[0].mxu0 %v408
    %v508 = vpop.f32.mrb[0].mxu0
    %v509 = vadd.f32 0.0, %v508
    %v510 = vpop.f32.mrb[0].mxu0
    %v511 = vpop.f32.mrb[0].mxu0
    %v512 = vpop.f32.mrb[0].mxu0
    %513 = vdwg.mxu0
    %514 = vst [vmem:[#allocation10] sm:$0x3] %v375
    %515 = vst [vmem:[#allocation10 + $0x2] sm:$0x3] %v509
    // Predicated region
    $region38: #{tpu_custom_call.1} parent=1 // pred_check
      _
    $region39: #{tpu_custom_call.1} parent=1 // pred_check_branch
      %517 = sbr.rel (0) target = $region41
    $region40: #{tpu_custom_call.1} parent=1 // pred_region
      %s519 = ssub.s32 64, 64
      %520 = vsyncadd [#allocation4], %s519
      %s522 = sshll.u32 [#allocation10], 4
      %s523 = int_to_ptr.vmem [resolvable:$true] %s522
      %525 = dma.vmem_to_hbm [thread:$0]  %s523, 64, %s5, [#allocation4]
    $region41: #{tpu_custom_call.1} parent=1 // pred_fallthru
      _
    // Predicated region
    $region42: #{tpu_custom_call.1} parent=1 // pred_check
      _
    $region43: #{tpu_custom_call.1} parent=1 // pred_check_branch
      %527 = sbr.rel (0) target = $region45
    $region44: #{tpu_custom_call.1} parent=1 // pred_region
      %528 = dma.done [#allocation4], 64
    $region45: #{tpu_custom_call.1} parent=1 // pred_fallthru
      _
    %529 = vsyncpa [#allocation3], 1
    %530 = vsyncpa [#allocation6], 1
    %531 = vsyncpa [#allocation9], 1
    %532 = vsyncpa [#allocation4], 1

</llo_original>
